<compile_context>
chip_gen: v6e
topology: v6e:2x2x1
jax: 0.10.0
libtpu: 0.0.40
codegen_flags: <defaults>
</compile_context>

<pallas_src>
import jax
import jax.numpy as jnp
from jax.experimental import pallas as pl
from jax.experimental.pallas import tpu as pltpu

_MAX_TILE_ROWS = 512  # keeps per-step double-buffered VMEM ~11.5 MiB (< v5e 16 MiB default)

_KEYS = ('addition', 'subtraction', 'multiplication', 'division',
         'greater_than', 'less_than', 'equal_to')


def _elementwise_kernel(x_ref,
                        add_ref, sub_ref, mul_ref, div_ref,
                        gt_ref, lt_ref, eq_ref):
    x = x_ref[...]
    # Arithmetic outputs (keep x's dtype; Python-float constants are weakly typed).
    add_ref[...] = x + 5.0
    sub_ref[...] = x - 3.0
    mul_ref[...] = x * 2.0
    div_ref[...] = x * 0.5          # bit-exact for x / 2 in binary float
    # Comparison outputs, stored directly as bool (no select / constant tensors).
    gt_ref[...] = x > 2.0
    lt_ref[...] = x < 5.0
    eq_ref[...] = x == 3.0


def _jnp_fallback(x):
    # Used only for tiny / non-128-divisible inputs where kernel launch overhead
    # and layout padding would dominate; exactly equivalent semantics.
    return {
        'addition': x + 5.0,
        'subtraction': x - 3.0,
        'multiplication': x * 2.0,
        'division': x * 0.5,
        'greater_than': x > 2.0,
        'less_than': x < 5.0,
        'equal_to': x == 3.0,
    }


def pt_module_forward(x):
    """Reproduces PtModule.forward: returns a dict of elementwise results."""
    orig_shape = x.shape
    dtype = x.dtype
    total = x.size

    # Pick the widest lane-dense slab width that divides the flattened size
    # exactly (no jnp.pad on input, no slicing of outputs). Prefer a width that
    # also makes the sublane count a multiple of 8.
    lanes = None
    for cand in (512, 256, 128):
        if total % cand == 0 and (total // cand) % 8 == 0:
            lanes = cand
            break
    if lanes is None:
        for cand in (512, 256, 128):
            if total % cand == 0:
                lanes = cand
                break
    if lanes is None or total < 1024:
        return _jnp_fallback(x)

    rows = total // lanes

    if rows < 64:
        # Single block covering the whole array (block_shape == array shape is
        # always a legal BlockSpec, regardless of (8,128) divisibility).
        tile_rows = rows
    else:
        # Guarantee >= 2 grid steps (v7x megacore sharding) and keep tile_rows a
        # multiple of 32 so the packed bool/int8 (32,128) output tiling is
        # respected. A final partial block (rows % tile_rows != 0) is handled by
        # Pallas's masked boundary reads/writes — no explicit padding needed.
        half = -(-rows // 2)
        tile_rows = min(_MAX_TILE_ROWS, ((half + 31) // 32) * 32)

    grid = (pl.cdiv(rows, tile_rows),)
    spec = pl.BlockSpec((tile_rows, lanes), lambda i: (i, 0))

    x2d = x.reshape(rows, lanes)

    f32_shape = jax.ShapeDtypeStruct((rows, lanes), dtype)
    bool_shape = jax.ShapeDtypeStruct((rows, lanes), jnp.bool_)
    out_shapes = (f32_shape,) * 4 + (bool_shape,) * 3

    outs = pl.pallas_call(
        _elementwise_kernel,
        out_shape=out_shapes,
        grid=grid,
        in_specs=[spec],
        out_specs=tuple([spec] * 7),
        compiler_params=pltpu.CompilerParams(
            dimension_semantics=("parallel",)),
        # ~23 B/elem moved (1 f32 in, 4 f32 + 3 bool out); helps XLA overlap
        # neighbouring ops with this purely HBM-bound call.
        cost_estimate=pl.CostEstimate(
            flops=7 * total, transcendentals=0, bytes_accessed=23 * total),
    )(x2d)

    return {k: o.reshape(orig_shape) for k, o in zip(_KEYS, outs)}


def _check(x):
    out = pt_module_forward(x)
    jax.block_until_ready(out)
    ref = {
        'addition': x + 5,
        'subtraction': x - 3,
        'multiplication': x * 2,
        'division': x / 2,
        'greater_than': x > 2,
        'less_than': x < 5,
        'equal_to': x == 3,
    }
    for k, r in ref.items():
        assert out[k].shape == r.shape, f"shape mismatch in {k}"
        assert out[k].dtype == r.dtype, f"dtype mismatch in {k}"
        if r.dtype == jnp.bool_:
            assert bool(jnp.all(out[k] == r)), f"mismatch in {k}"
        else:
            assert bool(jnp.allclose(out[k], r, atol=1e-6)), f"mismatch in {k}"


if __name__ == "__main__":
    key = jax.random.PRNGKey(0)

    # Small NCHW input consistent with a generic elementwise module.
    B, C, H, W = 2, 4, 16, 16
    x = jax.random.normal(key, (B, C, H, W), dtype=jnp.float32) * 3.0
    # Inject a few exact 3.0 values so 'equal_to' is non-trivial.
    x = x.at[0, 0, 0, :4].set(3.0)
    _check(x)

    # Larger input exercising the multi-step, ragged-grid (partial last block) path.
    x2 = jax.random.normal(jax.random.PRNGKey(1), (2, 3, 224, 224),
                           dtype=jnp.float32) * 3.0
    x2 = x2.at[0, 0, 0, :8].set(3.0)
    _check(x2)

    print("KERNEL_OK")
</pallas_src>

<mosaic_0001>
module attributes {stable_mosaic.version = 11 : i64} {
  func.func @_elementwise_kernel(%arg0: i32, %arg1: memref<8x256xf32, #tpu.memory_space<vmem>>, %arg2: memref<8x256xf32, #tpu.memory_space<vmem>>, %arg3: memref<8x256xf32, #tpu.memory_space<vmem>>, %arg4: memref<8x256xf32, #tpu.memory_space<vmem>>, %arg5: memref<8x256xf32, #tpu.memory_space<vmem>>, %arg6: memref<8x256xi32, #tpu.memory_space<vmem>>, %arg7: memref<8x256xi32, #tpu.memory_space<vmem>>, %arg8: memref<8x256xi32, #tpu.memory_space<vmem>>) attributes {dimension_semantics = [#tpu.dimension_semantics<parallel>], iteration_bounds = array<i64: 1>, scalar_prefetch = 0 : i64, scratch_operands = 0 : i64, tpu.core_type = #tpu.core_type<tc>, window_params = [{transform_indices = @transform_0, window_bounds = array<i64: 8, 256>}, {transform_indices = @transform_1, window_bounds = array<i64: 8, 256>}, {transform_indices = @transform_2, window_bounds = array<i64: 8, 256>}, {transform_indices = @transform_3, window_bounds = array<i64: 8, 256>}, {transform_indices = @transform_4, window_bounds = array<i64: 8, 256>}, {transform_indices = @transform_5, window_bounds = array<i64: 8, 256>}, {transform_indices = @transform_6, window_bounds = array<i64: 8, 256>}, {transform_indices = @transform_7, window_bounds = array<i64: 8, 256>}]} {
    %c0 = arith.constant 0 : index
    %c0_0 = arith.constant 0 : index
    %0 = vector.load %arg1[%c0, %c0_0] : memref<8x256xf32, #tpu.memory_space<vmem>>, vector<8x256xf32>
    %cst = arith.constant 5.000000e+00 : f32
    %1 = vector.broadcast %cst : f32 to vector<8x256xf32>
    %2 = arith.addf %0, %1 : vector<8x256xf32>
    %c0_1 = arith.constant 0 : index
    %c0_2 = arith.constant 0 : index
    %3 = vector.load %arg2[%c0_1, %c0_2] : memref<8x256xf32, #tpu.memory_space<vmem>>, vector<8x256xf32>
    tpu.vector_store %arg2[%c0_1, %c0_2], %2 {strides = array<i32>} : memref<8x256xf32, #tpu.memory_space<vmem>>, vector<8x256xf32>,
    %cst_3 = arith.constant 3.000000e+00 : f32
    %4 = vector.broadcast %cst_3 : f32 to vector<8x256xf32>
    %5 = arith.subf %0, %4 : vector<8x256xf32>
    %c0_4 = arith.constant 0 : index
    %c0_5 = arith.constant 0 : index
    %6 = vector.load %arg3[%c0_4, %c0_5] : memref<8x256xf32, #tpu.memory_space<vmem>>, vector<8x256xf32>
    tpu.vector_store %arg3[%c0_4, %c0_5], %5 {strides = array<i32>} : memref<8x256xf32, #tpu.memory_space<vmem>>, vector<8x256xf32>,
    %cst_6 = arith.constant 2.000000e+00 : f32
    %7 = vector.broadcast %cst_6 : f32 to vector<8x256xf32>
    %8 = arith.mulf %0, %7 : vector<8x256xf32>
    %c0_7 = arith.constant 0 : index
    %c0_8 = arith.constant 0 : index
    %9 = vector.load %arg4[%c0_7, %c0_8] : memref<8x256xf32, #tpu.memory_space<vmem>>, vector<8x256xf32>
    tpu.vector_store %arg4[%c0_7, %c0_8], %8 {strides = array<i32>} : memref<8x256xf32, #tpu.memory_space<vmem>>, vector<8x256xf32>,
    %cst_9 = arith.constant 5.000000e-01 : f32
    %10 = vector.broadcast %cst_9 : f32 to vector<8x256xf32>
    %11 = arith.mulf %0, %10 : vector<8x256xf32>
    %c0_10 = arith.constant 0 : index
    %c0_11 = arith.constant 0 : index
    %12 = vector.load %arg5[%c0_10, %c0_11] : memref<8x256xf32, #tpu.memory_space<vmem>>, vector<8x256xf32>
    tpu.vector_store %arg5[%c0_10, %c0_11], %11 {strides = array<i32>} : memref<8x256xf32, #tpu.memory_space<vmem>>, vector<8x256xf32>,
    %cst_12 = arith.constant 2.000000e+00 : f32
    %13 = vector.broadcast %cst_12 : f32 to vector<8x256xf32>
    %14 = arith.cmpf ogt, %0, %13 : vector<8x256xf32>
    %c0_13 = arith.constant 0 : index
    %c0_14 = arith.constant 0 : index
    %15 = vector.load %arg6[%c0_13, %c0_14] : memref<8x256xi32, #tpu.memory_space<vmem>>, vector<8x256xi32>
    %16 = arith.extui %14 : vector<8x256xi1> to vector<8x256xi32>
    %cst_15 = arith.constant dense<0> : vector<8x256xi32>
    %17 = arith.cmpi ne, %15, %cst_15 : vector<8x256xi32>
    tpu.vector_store %arg6[%c0_13, %c0_14], %16 {strides = array<i32>} : memref<8x256xi32, #tpu.memory_space<vmem>>, vector<8x256xi32>,
    %cst_16 = arith.constant 5.000000e+00 : f32
    %18 = vector.broadcast %cst_16 : f32 to vector<8x256xf32>
    %19 = arith.cmpf olt, %0, %18 : vector<8x256xf32>
    %c0_17 = arith.constant 0 : index
    %c0_18 = arith.constant 0 : index
    %20 = vector.load %arg7[%c0_17, %c0_18] : memref<8x256xi32, #tpu.memory_space<vmem>>, vector<8x256xi32>
    %21 = arith.extui %19 : vector<8x256xi1> to vector<8x256xi32>
    %cst_19 = arith.constant dense<0> : vector<8x256xi32>
    %22 = arith.cmpi ne, %20, %cst_19 : vector<8x256xi32>
    tpu.vector_store %arg7[%c0_17, %c0_18], %21 {strides = array<i32>} : memref<8x256xi32, #tpu.memory_space<vmem>>, vector<8x256xi32>,
    %cst_20 = arith.constant 3.000000e+00 : f32
    %23 = vector.broadcast %cst_20 : f32 to vector<8x256xf32>
    %24 = arith.cmpf oeq, %0, %23 : vector<8x256xf32>
    %c0_21 = arith.constant 0 : index
    %c0_22 = arith.constant 0 : index
    %25 = vector.load %arg8[%c0_21, %c0_22] : memref<8x256xi32, #tpu.memory_space<vmem>>, vector<8x256xi32>
    %26 = arith.extui %24 : vector<8x256xi1> to vector<8x256xi32>
    %cst_23 = arith.constant dense<0> : vector<8x256xi32>
    %27 = arith.cmpi ne, %25, %cst_23 : vector<8x256xi32>
    tpu.vector_store %arg8[%c0_21, %c0_22], %26 {strides = array<i32>} : memref<8x256xi32, #tpu.memory_space<vmem>>, vector<8x256xi32>,
    return
  }
  func.func @transform_0(%arg0: i32) -> (i32, i32) {
    %c0_i32 = arith.constant 0 : i32
    %c0_i32_0 = arith.constant 0 : i32
    return %arg0, %c0_i32 : i32, i32
  }
  func.func @transform_1(%arg0: i32) -> (i32, i32) {
    %c0_i32 = arith.constant 0 : i32
    %c0_i32_0 = arith.constant 0 : i32
    return %arg0, %c0_i32 : i32, i32
  }
  func.func @transform_2(%arg0: i32) -> (i32, i32) {
    %c0_i32 = arith.constant 0 : i32
    %c0_i32_0 = arith.constant 0 : i32
    return %arg0, %c0_i32 : i32, i32
  }
  func.func @transform_3(%arg0: i32) -> (i32, i32) {
    %c0_i32 = arith.constant 0 : i32
    %c0_i32_0 = arith.constant 0 : i32
    return %arg0, %c0_i32 : i32, i32
  }
  func.func @transform_4(%arg0: i32) -> (i32, i32) {
    %c0_i32 = arith.constant 0 : i32
    %c0_i32_0 = arith.constant 0 : i32
    return %arg0, %c0_i32 : i32, i32
  }
  func.func @transform_5(%arg0: i32) -> (i32, i32) {
    %c0_i32 = arith.constant 0 : i32
    %c0_i32_0 = arith.constant 0 : i32
    return %arg0, %c0_i32 : i32, i32
  }
  func.func @transform_6(%arg0: i32) -> (i32, i32) {
    %c0_i32 = arith.constant 0 : i32
    %c0_i32_0 = arith.constant 0 : i32
    return %arg0, %c0_i32 : i32, i32
  }
  func.func @transform_7(%arg0: i32) -> (i32, i32) {
    %c0_i32 = arith.constant 0 : i32
    %c0_i32_0 = arith.constant 0 : i32
    return %arg0, %c0_i32 : i32, i32
  }
}

</mosaic_0001>

<llo_original>
// kernel: tpu_custom_call.1
$region0: #{tpu_custom_call.1}
  #allocation0 [shape = 'u32[]', space=smem, size = 0x4, offset = 0x4, fixed_abs, tag = 'smem constant byte address 0x4 - core index']
  #allocation1 [shape = 'u32[144,128]{1,0:T(1,128)}', space=vmem, size = 0x12000, scoped, tag = 'internal scratch']
  %s0 = inlined_call_operand.hbm [shape: f32[8,256], index: 0, kind: input, shape index: {}]
  %s1 = inlined_call_operand.hbm [shape: f32[8,256], index: 1, kind: output, shape index: {0}]
  %s2 = inlined_call_operand.hbm [shape: f32[8,256], index: 2, kind: output, shape index: {1}]
  %s3 = inlined_call_operand.hbm [shape: f32[8,256], index: 3, kind: output, shape index: {2}]
  %s4 = inlined_call_operand.hbm [shape: f32[8,256], index: 4, kind: output, shape index: {3}]
  %s5 = inlined_call_operand.vmem [shape: s32[8,256], index: 5, kind: output, shape index: {4}]
  %s6 = inlined_call_operand.vmem [shape: s32[8,256], index: 6, kind: output, shape index: {5}]
  %s7 = inlined_call_operand.vmem [shape: s32[8,256], index: 7, kind: output, shape index: {6}]
  %8 = xla_tuple %s1, %s2, %s3, %s4, %s5, %s6, %s7
  %s9 = sld [smem:[#allocation0]]
  $region66: #{tpu_custom_call.1} parent=0
    _
  %s11 = ssub.s32 1, %s9
  %s12 = scalar_select 0, %s11, %s9
  $region1: #{tpu_custom_call.1} parent=0
    #allocation2 [shape = 'u8[8192]{0}', space=vmem, size = 0x2000, scoped, tag = 'input window, operand 0, single buffered']
    #allocation3 [shape = 's32[1]{0}', space=sflag, size = 0x4, scoped, tag = 'scoped memory for tpu_custom_call.1']
    #allocation4 [shape = 's32[1]{0}', space=sflag, size = 0x4, scoped, tag = 'scoped memory for tpu_custom_call.1']
    #allocation5 [shape = 'u8[8192]{0}', space=vmem, size = 0x2000, scoped, tag = 'output window, operand 0, single buffered']
    #allocation6 [shape = 'u8[8192]{0}', space=vmem, size = 0x2000, scoped, tag = 'output window, operand 1, single buffered']
    #allocation7 [shape = 's32[1]{0}', space=sflag, size = 0x4, scoped, tag = 'scoped memory for tpu_custom_call.1']
    #allocation8 [shape = 'u8[8192]{0}', space=vmem, size = 0x2000, scoped, tag = 'output window, operand 2, single buffered']
    #allocation9 [shape = 'u8[8192]{0}', space=vmem, size = 0x2000, scoped, tag = 'output window, operand 3, single buffered']
    #allocation10 [shape = 's32[1]{0}', space=sflag, size = 0x4, scoped, tag = 'scoped memory for tpu_custom_call.1']
    %13 = vsyncpa [#allocation3], 0
    %14 = vsyncpa [#allocation4], 0
    %15 = vsyncpa [#allocation7], 0
    %16 = vsyncpa [#allocation10], 0
    // Predicated region
    $region2: #{tpu_custom_call.1} parent=1 // pred_check
      _
    $region3: #{tpu_custom_call.1} parent=1 // pred_check_branch
      %18 = sbr.rel (0) target = $region5
    $region4: #{tpu_custom_call.1} parent=1 // pred_region
      %s20 = ssub.s32 256, 256
      %21 = vsyncadd [#allocation3], %s20
      %s23 = sshll.u32 [#allocation2], 4
      %s24 = int_to_ptr.vmem [resolvable:$true] %s23
      %26 = dma.hbm_to_vmem [thread:$0]  %s0, 256, %s24, [#allocation3]
    $region5: #{tpu_custom_call.1} parent=1 // pred_fallthru
      _
    // Predicated region
    $region6: #{tpu_custom_call.1} parent=1 // pred_check
      _
    $region7: #{tpu_custom_call.1} parent=1 // pred_check_branch
      %28 = sbr.rel (0) target = $region9
    $region8: #{tpu_custom_call.1} parent=1 // pred_region
      %29 = dma.done [#allocation3], 256
    $region9: #{tpu_custom_call.1} parent=1 // pred_fallthru
      _
    %v30 = vld [vmem:[#allocation2] sm:$0xff]
    %v31 = vld [vmem:[#allocation2 + $0x8] sm:$0xff]
    %v32 = vadd.f32 %v30, 5.0
    %v33 = vadd.f32 %v31, 5.0
    %34 = vst [vmem:[#allocation5] sm:$0xff] %v32
    %35 = vst [vmem:[#allocation5 + $0x8] sm:$0xff] %v33
    %v36 = vsub.f32 %v30, 3.0
    %v37 = vsub.f32 %v31, 3.0
    %38 = vst [vmem:[#allocation6] sm:$0xff] %v36
    %39 = vst [vmem:[#allocation6 + $0x8] sm:$0xff] %v37
    %v40 = vmul.f32 %v30, 2.0
    %v41 = vmul.f32 %v31, 2.0
    %42 = vst [vmem:[#allocation8] sm:$0xff] %v40
    %43 = vst [vmem:[#allocation8 + $0x8] sm:$0xff] %v41
    %v44 = vmul.f32 %v30, 0.5
    %v45 = vmul.f32 %v31, 0.5
    %46 = vst [vmem:[#allocation9] sm:$0xff] %v44
    %47 = vst [vmem:[#allocation9 + $0x8] sm:$0xff] %v45
    %vm48 = vcmp.gt.f32.partialorder %v30, 2.0
    %vm49 = vcmp.gt.f32.partialorder %v31, 2.0
    %v50 = vsel %vm48, 1, 0
    %v51 = vsel %vm49, 1, 0
    %52 = vst [vmem:[%s5] sm:$0xff] %v50
    %53 = vst [vmem:[%s5 + $0x8] sm:$0xff] %v51
    %vm54 = vcmp.lt.f32.partialorder %v30, 5.0
    %vm55 = vcmp.lt.f32.partialorder %v31, 5.0
    %v56 = vsel %vm54, 1, 0
    %v57 = vsel %vm55, 1, 0
    %58 = vst [vmem:[%s6] sm:$0xff] %v56
    %59 = vst [vmem:[%s6 + $0x8] sm:$0xff] %v57
    %vm60 = vcmp.eq.f32.partialorder %v30, 3.0
    %vm61 = vcmp.eq.f32.partialorder %v31, 3.0
    %v62 = vsel %vm60, 1, 0
    %v63 = vsel %vm61, 1, 0
    %64 = vst [vmem:[%s7] sm:$0xff] %v62
    %65 = vst [vmem:[%s7 + $0x8] sm:$0xff] %v63
    // Predicated region
    $region10: #{tpu_custom_call.1} parent=1 // pred_check
      _
    $region11: #{tpu_custom_call.1} parent=1 // pred_check_branch
      %67 = sbr.rel (0) target = $region13
    $region12: #{tpu_custom_call.1} parent=1 // pred_region
      %s69 = ssub.s32 256, 256
      %70 = vsyncadd [#allocation4], %s69
      %s72 = sshll.u32 [#allocation5], 4
      %s73 = int_to_ptr.vmem [resolvable:$true] %s72
      %75 = dma.vmem_to_hbm [thread:$0]  %s73, 256, %s1, [#allocation4]
    $region13: #{tpu_custom_call.1} parent=1 // pred_fallthru
      _
    // Predicated region
    $region14: #{tpu_custom_call.1} parent=1 // pred_check
      _
    $region15: #{tpu_custom_call.1} parent=1 // pred_check_branch
      %77 = sbr.rel (0) target = $region17
    $region16: #{tpu_custom_call.1} parent=1 // pred_region
      %s79 = ssub.s32 256, 256
      %80 = vsyncadd [#allocation7], %s79
      %s82 = sshll.u32 [#allocation6], 4
      %s83 = int_to_ptr.vmem [resolvable:$true] %s82
      %85 = dma.vmem_to_hbm [thread:$0]  %s83, 256, %s2, [#allocation7]
    $region17: #{tpu_custom_call.1} parent=1 // pred_fallthru
      _
    // Predicated region
    $region18: #{tpu_custom_call.1} parent=1 // pred_check
      _
    $region19: #{tpu_custom_call.1} parent=1 // pred_check_branch
      %87 = sbr.rel (0) target = $region21
    $region20: #{tpu_custom_call.1} parent=1 // pred_region
      %s89 = ssub.s32 256, 256
      %90 = vsyncadd [#allocation7], %s89
      %s92 = sshll.u32 [#allocation8], 4
      %s93 = int_to_ptr.vmem [resolvable:$true] %s92
      %95 = dma.vmem_to_hbm [thread:$0]  %s93, 256, %s3, [#allocation7]
    $region21: #{tpu_custom_call.1} parent=1 // pred_fallthru
      _
    // Predicated region
    $region22: #{tpu_custom_call.1} parent=1 // pred_check
      _
    $region23: #{tpu_custom_call.1} parent=1 // pred_check_branch
      %97 = sbr.rel (0) target = $region25
    $region24: #{tpu_custom_call.1} parent=1 // pred_region
      %s99 = ssub.s32 256, 256
      %100 = vsyncadd [#allocation10], %s99
      %s102 = sshll.u32 [#allocation9], 4
      %s103 = int_to_ptr.vmem [resolvable:$true] %s102
      %105 = dma.vmem_to_hbm [thread:$0]  %s103, 256, %s4, [#allocation10]
    $region25: #{tpu_custom_call.1} parent=1 // pred_fallthru
      _
    // Predicated region
    $region26: #{tpu_custom_call.1} parent=1 // pred_check
      _
    $region27: #{tpu_custom_call.1} parent=1 // pred_check_branch
      %107 = sbr.rel (0) target = $region29
    $region28: #{tpu_custom_call.1} parent=1 // pred_region
      _
    $region29: #{tpu_custom_call.1} parent=1 // pred_fallthru
      _
    // Predicated region
    $region30: #{tpu_custom_call.1} parent=1 // pred_check
      _
    $region31: #{tpu_custom_call.1} parent=1 // pred_check_branch
      %109 = sbr.rel (0) target = $region33
    $region32: #{tpu_custom_call.1} parent=1 // pred_region
      _
    $region33: #{tpu_custom_call.1} parent=1 // pred_fallthru
      _
    // Predicated region
    $region34: #{tpu_custom_call.1} parent=1 // pred_check
      _
    $region35: #{tpu_custom_call.1} parent=1 // pred_check_branch
      %111 = sbr.rel (0) target = $region37
    $region36: #{tpu_custom_call.1} parent=1 // pred_region
      _
    $region37: #{tpu_custom_call.1} parent=1 // pred_fallthru
      _
    // Predicated region
    $region38: #{tpu_custom_call.1} parent=1 // pred_check
      _
    $region39: #{tpu_custom_call.1} parent=1 // pred_check_branch
      %113 = sbr.rel (0) target = $region41
    $region40: #{tpu_custom_call.1} parent=1 // pred_region
      %114 = dma.done [#allocation4], 256
    $region41: #{tpu_custom_call.1} parent=1 // pred_fallthru
      _
    // Predicated region
    $region42: #{tpu_custom_call.1} parent=1 // pred_check
      _
    $region43: #{tpu_custom_call.1} parent=1 // pred_check_branch
      %116 = sbr.rel (0) target = $region45
    $region44: #{tpu_custom_call.1} parent=1 // pred_region
      %117 = dma.done [#allocation7], 256
    $region45: #{tpu_custom_call.1} parent=1 // pred_fallthru
      _
    // Predicated region
    $region46: #{tpu_custom_call.1} parent=1 // pred_check
      _
    $region47: #{tpu_custom_call.1} parent=1 // pred_check_branch
      %119 = sbr.rel (0) target = $region49
    $region48: #{tpu_custom_call.1} parent=1 // pred_region
      %120 = dma.done [#allocation7], 256
    $region49: #{tpu_custom_call.1} parent=1 // pred_fallthru
      _
    // Predicated region
    $region50: #{tpu_custom_call.1} parent=1 // pred_check
      _
    $region51: #{tpu_custom_call.1} parent=1 // pred_check_branch
      %122 = sbr.rel (0) target = $region53
    $region52: #{tpu_custom_call.1} parent=1 // pred_region
      %123 = dma.done [#allocation10], 256
    $region53: #{tpu_custom_call.1} parent=1 // pred_fallthru
      _
    // Predicated region
    $region54: #{tpu_custom_call.1} parent=1 // pred_check
      _
    $region55: #{tpu_custom_call.1} parent=1 // pred_check_branch
      %125 = sbr.rel (0) target = $region57
    $region56: #{tpu_custom_call.1} parent=1 // pred_region
      _
    $region57: #{tpu_custom_call.1} parent=1 // pred_fallthru
      _
    // Predicated region
    $region58: #{tpu_custom_call.1} parent=1 // pred_check
      _
    $region59: #{tpu_custom_call.1} parent=1 // pred_check_branch
      %127 = sbr.rel (0) target = $region61
    $region60: #{tpu_custom_call.1} parent=1 // pred_region
      _
    $region61: #{tpu_custom_call.1} parent=1 // pred_fallthru
      _
    // Predicated region
    $region62: #{tpu_custom_call.1} parent=1 // pred_check
      _
    $region63: #{tpu_custom_call.1} parent=1 // pred_check_branch
      %129 = sbr.rel (0) target = $region65
    $region64: #{tpu_custom_call.1} parent=1 // pred_region
      _
    $region65: #{tpu_custom_call.1} parent=1 // pred_fallthru
      _
    %130 = vsyncpa [#allocation3], 1
    %131 = vsyncpa [#allocation4], 1
    %132 = vsyncpa [#allocation7], 1
    %133 = vsyncpa [#allocation10], 1

</llo_original>
